<compile_context>
chip_gen: v7x
topology: tpu7x:2x2x1
jax: 0.10.0
libtpu: 0.0.40
codegen_flags: <defaults>
</compile_context>

<pallas_src>
import functools

import jax
import jax.numpy as jnp
from jax.experimental import pallas as pl
from jax.experimental.pallas import tpu as pltpu

NUM_TRG_CLASSES = 35
NUM_ARG_CLASSES = 24

_DEFAULT_TILE_ROWS = 8192  # rows per grid step (LANE axis -> multiple of 128)


def _round_up(x, m):
    return (x + m - 1) // m * m


def _ce_tile_partials(logits, labels, w_i):
    """Partial sums for weighted softmax CE on one transposed (C, T) tile.

    logits: (C, T) native dtype (upcast to f32 here)
    labels: (1, T) int32   (padding rows carry -1 -> no class hit)
    w_i:    (1, T) f32     (= weight[label] for valid rows, 0 for padding rows)
    Returns rank-0 f32 (num, den):
      num = sum_t w_i[t] * (logsumexp(x[:, t]) - x[label[t], t])
      den = sum_t w_i[t]
    Rows sit on the LANE axis, classes on the SUBLANE axis, so every vector op
    touches only ceil(C/8) sublanes of real data per 128 rows.
    """
    x = logits.astype(jnp.float32)
    c, t = x.shape
    cls = jax.lax.broadcasted_iota(jnp.int32, (c, t), 0)
    hit = cls == labels                                   # (C, T) bool
    m = jnp.max(x, axis=0, keepdims=True)                 # (1, T)
    lse = jnp.log(jnp.sum(jnp.exp(x - m), axis=0, keepdims=True)) + m
    picked = jnp.sum(jnp.where(hit, x, 0.0), axis=0, keepdims=True)   # x[label]
    num = jnp.sum(w_i * (lse - picked))
    den = jnp.sum(w_i)
    return num, den


def _fused_ce_kernel(nt1, nt2, n_tiles,
                     l1_ref, y1_ref, w1_ref,
                     l2_ref, y2_ref, w2_ref,
                     out_ref):
    i = pl.program_id(0)
    sub = jax.lax.broadcasted_iota(jnp.int32, (8, 128), 0)

    # Each grid step owns its own (8, 128) output block; zero it, then add the
    # four scalars (num1, den1, num2, den2) into sublanes 0..3.
    out_ref[0] = jnp.zeros((8, 128), jnp.float32)

    def loss1_tile():
        num, den = _ce_tile_partials(l1_ref[...], y1_ref[...], w1_ref[...])
        out_ref[0] += (jnp.where(sub == 0, num, 0.0)
                       + jnp.where(sub == 1, den, 0.0))

    def loss2_tile():
        num, den = _ce_tile_partials(l2_ref[...], y2_ref[...], w2_ref[...])
        out_ref[0] += (jnp.where(sub == 2, num, 0.0)
                       + jnp.where(sub == 3, den, 0.0))

    # Predicate (pl.when) the shorter loss instead of compute-and-zero; skip the
    # branch entirely when a loss covers every grid step (nt* are Python ints).
    if nt1 >= n_tiles:
        loss1_tile()
    else:
        pl.when(i < nt1)(loss1_tile)

    if nt2 >= n_tiles:
        loss2_tile()
    else:
        pl.when(i < nt2)(loss2_tile)


def _prep(logits, labels, weight, rows_padded):
    """Transpose logits to (C, N_padded), pad rows, pre-gather per-row weights."""
    n, c = logits.shape
    lbl = labels.astype(jnp.int32)
    w = weight.astype(jnp.float32)
    # Per-row weight; 0 for padding rows (label < 0).  Tiny O(N) XLA gather.
    # NOTE: positive out-of-range labels (label >= C) are assumed not to occur
    # (torch would raise); they would silently contribute a clipped weight here.
    w_i = jnp.where(lbl >= 0, w[jnp.clip(lbl, 0, c - 1)], 0.0)
    pad = rows_padded - n
    lt = jnp.pad(logits.T, ((0, 0), (0, pad)))                    # (C, NP) native dtype
    yt = jnp.pad(lbl, ((0, pad),), constant_values=-1)[None, :]   # (1, NP) int32
    wt = jnp.pad(w_i, ((0, pad),))[None, :]                       # (1, NP) f32
    return lt, yt, wt


def fused_weighted_cross_entropy(logits1, labels1, weight1,
                                 logits2, labels2, weight2,
                                 tile_rows=_DEFAULT_TILE_ROWS):
    """Both mean-reduced weighted CE losses in ONE pallas_call.

    Logits keep their native dtype in HBM (bf16 stays bf16); the f32 upcast
    happens in VMEM inside the kernel.  The wrapper transpose / weight gather
    are cheap O(N*C) / O(N) XLA ops next to the (compute-bound) kernel.
    """
    n1, c1 = logits1.shape
    n2, c2 = logits2.shape
    if n1 == 0 or n2 == 0:
        raise ValueError("fused_weighted_cross_entropy requires non-empty inputs")

    # Rows live on the LANE axis -> tile_rows must be a multiple of 128.
    tile_rows = max(128, min(_round_up(tile_rows, 128),
                             _round_up(max(n1, n2), 128)))

    np1 = _round_up(n1, tile_rows)
    np2 = _round_up(n2, tile_rows)
    nt1 = np1 // tile_rows
    nt2 = np2 // tile_rows
    n_tiles = max(nt1, nt2)

    l1, y1, w1 = _prep(logits1, labels1, weight1, np1)
    l2, y2, w2 = _prep(logits2, labels2, weight2, np2)

    # Extra grid steps (when one loss has fewer tiles) revisit that loss' last
    # already-resident tile (no new DMA); their compute is pl.when-gated.
    col1 = lambda i: (0, jnp.minimum(i, nt1 - 1))
    col2 = lambda i: (0, jnp.minimum(i, nt2 - 1))

    parts = pl.pallas_call(
        functools.partial(_fused_ce_kernel, nt1, nt2, n_tiles),
        out_shape=jax.ShapeDtypeStruct((n_tiles, 8, 128), jnp.float32),
        grid=(n_tiles,),
        in_specs=[
            pl.BlockSpec((c1, tile_rows), col1),   # trigger logits (C, T)
            pl.BlockSpec((1, tile_rows), col1),    # trigger labels (1, T)
            pl.BlockSpec((1, tile_rows), col1),    # trigger per-row weights
            pl.BlockSpec((c2, tile_rows), col2),   # argument logits (C, T)
            pl.BlockSpec((1, tile_rows), col2),    # argument labels
            pl.BlockSpec((1, tile_rows), col2),    # argument per-row weights
        ],
        out_specs=pl.BlockSpec((1, 8, 128), lambda i: (i, 0, 0)),
        compiler_params=pltpu.CompilerParams(
            dimension_semantics=("parallel",),     # v7x: shard tiles on both TCs
            vmem_limit_bytes=32 * 1024 * 1024,     # explicit (v5e default is 16 MiB)
        ),
    )(l1, y1, w1, l2, y2, w2)

    # Tiny final reduction / divide in plain JAX.
    num1 = jnp.sum(parts[:, 0, 0])
    den1 = jnp.sum(parts[:, 1, 0])
    num2 = jnp.sum(parts[:, 2, 0])
    den2 = jnp.sum(parts[:, 3, 0])
    # NOTE: den == 0 (all selected class weights zero) yields NaN, same as torch.
    return num1 / den1, num2 / den2


def jrnn_loss(T, T_label, A_pred, A_label, entity_idx,
              weight_trg=None, weight_arg=None):
    """Forward pass of JRNNLoss (non-empty entity_idx path)."""
    if weight_trg is None:
        weight_trg = jnp.ones((NUM_TRG_CLASSES,), jnp.float32)
    if weight_arg is None:
        weight_arg = jnp.ones((NUM_ARG_CLASSES,), jnp.float32)

    # loss_1 inputs: trigger CE over 35 classes.
    T2 = T.reshape(-1, NUM_TRG_CLASSES)
    Tl = T_label.reshape(-1)

    # loss_2 inputs: argument CE over 24 classes on rows selected by entity_idx.
    # TODO(synk): the len(entity_idx)==0 branch of the reference leaves `loss`
    # undefined (a bug in the original module); only the non-empty path exists.
    Al = A_label.reshape(-1, A_label.shape[1])
    Al = Al[entity_idx, :]
    Ap = A_pred.reshape(-1, NUM_ARG_CLASSES)
    Al = Al.reshape(-1)

    loss_1, loss_2 = fused_weighted_cross_entropy(
        T2, Tl, weight_trg, Ap, Al, weight_arg)
    loss = loss_1 + loss_2
    return loss, loss_1, loss_2


if __name__ == "__main__":
    key = jax.random.PRNGKey(0)
    k_t, k_tl, k_ap, k_al = jax.random.split(key, 4)

    # Small synthetic shapes: batch=2, seq=8, 4 argument slots per entity, 3 entities.
    B, S, K, E = 2, 8, 4, 3

    T = jax.random.normal(k_t, (B, S, NUM_TRG_CLASSES), dtype=jnp.float32)
    T_label = jax.random.randint(k_tl, (B, S), 0, NUM_TRG_CLASSES, dtype=jnp.int32)

    A_label = jax.random.randint(k_al, (B * S, K), 0, NUM_ARG_CLASSES, dtype=jnp.int32)
    entity_idx = jnp.array([1, 5, 9], dtype=jnp.int32)          # E = 3 selected rows
    A_pred = jax.random.normal(k_ap, (E, K, NUM_ARG_CLASSES), dtype=jnp.float32)

    # Deterministic class weights (ones == unweighted default CrossEntropyLoss).
    weight_trg = jnp.ones((NUM_TRG_CLASSES,), dtype=jnp.float32)
    weight_arg = jnp.ones((NUM_ARG_CLASSES,), dtype=jnp.float32)

    loss, loss_1, loss_2 = jax.jit(jrnn_loss)(
        T, T_label, A_pred, A_label, entity_idx, weight_trg, weight_arg)
    jax.block_until_ready((loss, loss_1, loss_2))

    # Pure-JAX reference (same math as torch CrossEntropyLoss with weights).
    def _ce_ref(logits, labels, w):
        logits = logits.astype(jnp.float32)
        lse = jax.scipy.special.logsumexp(logits, axis=-1)
        picked = jnp.take_along_axis(logits, labels[:, None], axis=-1)[:, 0]
        wi = w[labels]
        return jnp.sum(wi * (lse - picked)) / jnp.sum(wi)

    ref1 = _ce_ref(T.reshape(-1, NUM_TRG_CLASSES), T_label.reshape(-1), weight_trg)
    Al_ref = A_label.reshape(-1, K)[entity_idx, :].reshape(-1)
    ref2 = _ce_ref(A_pred.reshape(-1, NUM_ARG_CLASSES), Al_ref, weight_arg)

    assert jnp.allclose(loss_1, ref1, atol=1e-4, rtol=1e-4), (loss_1, ref1)
    assert jnp.allclose(loss_2, ref2, atol=1e-4, rtol=1e-4), (loss_2, ref2)
    assert jnp.allclose(loss, ref1 + ref2, atol=1e-4, rtol=1e-4), (loss, ref1 + ref2)

    print("KERNEL_OK")
</pallas_src>

<mosaic_0001>
module attributes {stable_mosaic.version = 11 : i64} {
  func.func @_fused_ce_kernel(%arg0: i32, %arg1: memref<35x128xf32, #tpu.memory_space<vmem>>, %arg2: memref<1x128xi32, #tpu.memory_space<vmem>>, %arg3: memref<1x128xf32, #tpu.memory_space<vmem>>, %arg4: memref<24x128xf32, #tpu.memory_space<vmem>>, %arg5: memref<1x128xi32, #tpu.memory_space<vmem>>, %arg6: memref<1x128xf32, #tpu.memory_space<vmem>>, %arg7: memref<1x8x128xf32, #tpu.memory_space<vmem>>) attributes {dimension_semantics = [#tpu.dimension_semantics<parallel>], iteration_bounds = array<i64: 1>, scalar_prefetch = 0 : i64, scratch_operands = 0 : i64, tpu.core_type = #tpu.core_type<tc>, window_params = [{transform_indices = @transform_0, window_bounds = array<i64: 35, 128>}, {transform_indices = @transform_1, window_bounds = array<i64: 1, 128>}, {transform_indices = @transform_2, window_bounds = array<i64: 1, 128>}, {transform_indices = @transform_3, window_bounds = array<i64: 24, 128>}, {transform_indices = @transform_4, window_bounds = array<i64: 1, 128>}, {transform_indices = @transform_5, window_bounds = array<i64: 1, 128>}, {transform_indices = @transform_6, window_bounds = array<i64: 1, 8, 128>}]} {
    %0 = tpu.iota {dimensions = array<i32: 0>} : vector<8x128xi32>
    %cst = arith.constant 0.000000e+00 : f32
    %1 = vector.broadcast %cst : f32 to vector<8x128xf32>
    %c0 = arith.constant 0 : index
    %c0_0 = arith.constant 0 : index
    %c0_1 = arith.constant 0 : index
    %2 = vector.load %arg7[%c0, %c0_0, %c0_1] : memref<1x8x128xf32, #tpu.memory_space<vmem>>, vector<1x8x128xf32>
    %3 = vector.shape_cast %2 : vector<1x8x128xf32> to vector<8x128xf32>
    %4 = vector.shape_cast %1 : vector<8x128xf32> to vector<1x8x128xf32>
    tpu.vector_store %arg7[%c0, %c0_0, %c0_1], %4 {strides = array<i32>} : memref<1x8x128xf32, #tpu.memory_space<vmem>>, vector<1x8x128xf32>,
    %c0_2 = arith.constant 0 : index
    %c0_3 = arith.constant 0 : index
    %5 = vector.load %arg1[%c0_2, %c0_3] : memref<35x128xf32, #tpu.memory_space<vmem>>, vector<35x128xf32>
    %c0_4 = arith.constant 0 : index
    %c0_5 = arith.constant 0 : index
    %6 = vector.load %arg2[%c0_4, %c0_5] : memref<1x128xi32, #tpu.memory_space<vmem>>, vector<1x128xi32>
    %c0_6 = arith.constant 0 : index
    %c0_7 = arith.constant 0 : index
    %7 = vector.load %arg3[%c0_6, %c0_7] : memref<1x128xf32, #tpu.memory_space<vmem>>, vector<1x128xf32>
    %8 = tpu.iota {dimensions = array<i32: 0>} : vector<35x128xi32>
    %9 = vector.broadcast %6 : vector<1x128xi32> to vector<35x128xi32>
    %10 = arith.cmpi eq, %8, %9 : vector<35x128xi32>
    %cst_8 = arith.constant dense<0xFF800000> : vector<128xf32>
    %11 = vector.multi_reduction <maximumf>, %5, %cst_8 [0] : vector<35x128xf32> to vector<128xf32>
    %12 = vector.shape_cast %11 : vector<128xf32> to vector<1x128xf32>
    %13 = vector.broadcast %12 : vector<1x128xf32> to vector<35x128xf32>
    %14 = arith.subf %5, %13 : vector<35x128xf32>
    %15 = math.exp %14 : vector<35x128xf32>
    %cst_9 = arith.constant dense<0.000000e+00> : vector<128xf32>
    %16 = vector.multi_reduction <add>, %15, %cst_9 [0] : vector<35x128xf32> to vector<128xf32>
    %17 = vector.shape_cast %16 : vector<128xf32> to vector<1x128xf32>
    %18 = math.log %17 : vector<1x128xf32>
    %19 = arith.addf %18, %12 : vector<1x128xf32>
    %cst_10 = arith.constant 0.000000e+00 : f32
    %20 = vector.broadcast %cst_10 : f32 to vector<35x128xf32>
    %21 = arith.select %10, %5, %20 : vector<35x128xi1>, vector<35x128xf32>
    %cst_11 = arith.constant dense<0.000000e+00> : vector<128xf32>
    %22 = vector.multi_reduction <add>, %21, %cst_11 [0] : vector<35x128xf32> to vector<128xf32>
    %23 = vector.shape_cast %22 : vector<128xf32> to vector<1x128xf32>
    %24 = arith.subf %19, %23 : vector<1x128xf32>
    %25 = arith.mulf %7, %24 : vector<1x128xf32>
    %26 = vector.shape_cast %25 : vector<1x128xf32> to vector<1x1x128xf32>
    %cst_12 = arith.constant dense<0.000000e+00> : vector<1xf32>
    %27 = vector.multi_reduction <add>, %26, %cst_12 [1, 2] : vector<1x1x128xf32> to vector<1xf32>
    %28 = vector.shape_cast %27 : vector<1xf32> to vector<1x1x1xf32>
    %29 = vector.extract %28[0, 0, 0] : f32 from vector<1x1x1xf32>
    %30 = vector.shape_cast %7 : vector<1x128xf32> to vector<1x1x128xf32>
    %cst_13 = arith.constant dense<0.000000e+00> : vector<1xf32>
    %31 = vector.multi_reduction <add>, %30, %cst_13 [1, 2] : vector<1x1x128xf32> to vector<1xf32>
    %32 = vector.shape_cast %31 : vector<1xf32> to vector<1x1x1xf32>
    %33 = vector.extract %32[0, 0, 0] : f32 from vector<1x1x1xf32>
    %c0_14 = arith.constant 0 : index
    %c0_15 = arith.constant 0 : index
    %c0_16 = arith.constant 0 : index
    %34 = vector.load %arg7[%c0_14, %c0_15, %c0_16] : memref<1x8x128xf32, #tpu.memory_space<vmem>>, vector<1x8x128xf32>
    %35 = vector.shape_cast %34 : vector<1x8x128xf32> to vector<8x128xf32>
    %c0_i32 = arith.constant 0 : i32
    %36 = vector.broadcast %c0_i32 : i32 to vector<8x128xi32>
    %37 = arith.cmpi eq, %0, %36 : vector<8x128xi32>
    %cst_17 = arith.constant 0.000000e+00 : f32
    %38 = vector.broadcast %29 : f32 to vector<8x128xf32>
    %39 = vector.broadcast %cst_17 : f32 to vector<8x128xf32>
    %40 = arith.select %37, %38, %39 : vector<8x128xi1>, vector<8x128xf32>
    %c1_i32 = arith.constant 1 : i32
    %41 = vector.broadcast %c1_i32 : i32 to vector<8x128xi32>
    %42 = arith.cmpi eq, %0, %41 : vector<8x128xi32>
    %cst_18 = arith.constant 0.000000e+00 : f32
    %43 = vector.broadcast %33 : f32 to vector<8x128xf32>
    %44 = vector.broadcast %cst_18 : f32 to vector<8x128xf32>
    %45 = arith.select %42, %43, %44 : vector<8x128xi1>, vector<8x128xf32>
    %46 = arith.addf %40, %45 : vector<8x128xf32>
    %47 = arith.addf %35, %46 : vector<8x128xf32>
    %c0_19 = arith.constant 0 : index
    %c0_20 = arith.constant 0 : index
    %c0_21 = arith.constant 0 : index
    %48 = vector.load %arg7[%c0_19, %c0_20, %c0_21] : memref<1x8x128xf32, #tpu.memory_space<vmem>>, vector<1x8x128xf32>
    %49 = vector.shape_cast %48 : vector<1x8x128xf32> to vector<8x128xf32>
    %50 = vector.shape_cast %47 : vector<8x128xf32> to vector<1x8x128xf32>
    tpu.vector_store %arg7[%c0_19, %c0_20, %c0_21], %50 {strides = array<i32>} : memref<1x8x128xf32, #tpu.memory_space<vmem>>, vector<1x8x128xf32>,
    %c0_22 = arith.constant 0 : index
    %c0_23 = arith.constant 0 : index
    %51 = vector.load %arg4[%c0_22, %c0_23] : memref<24x128xf32, #tpu.memory_space<vmem>>, vector<24x128xf32>
    %c0_24 = arith.constant 0 : index
    %c0_25 = arith.constant 0 : index
    %52 = vector.load %arg5[%c0_24, %c0_25] : memref<1x128xi32, #tpu.memory_space<vmem>>, vector<1x128xi32>
    %c0_26 = arith.constant 0 : index
    %c0_27 = arith.constant 0 : index
    %53 = vector.load %arg6[%c0_26, %c0_27] : memref<1x128xf32, #tpu.memory_space<vmem>>, vector<1x128xf32>
    %54 = tpu.iota {dimensions = array<i32: 0>} : vector<24x128xi32>
    %55 = vector.broadcast %52 : vector<1x128xi32> to vector<24x128xi32>
    %56 = arith.cmpi eq, %54, %55 : vector<24x128xi32>
    %cst_28 = arith.constant dense<0xFF800000> : vector<128xf32>
    %57 = vector.multi_reduction <maximumf>, %51, %cst_28 [0] : vector<24x128xf32> to vector<128xf32>
    %58 = vector.shape_cast %57 : vector<128xf32> to vector<1x128xf32>
    %59 = vector.broadcast %58 : vector<1x128xf32> to vector<24x128xf32>
    %60 = arith.subf %51, %59 : vector<24x128xf32>
    %61 = math.exp %60 : vector<24x128xf32>
    %cst_29 = arith.constant dense<0.000000e+00> : vector<128xf32>
    %62 = vector.multi_reduction <add>, %61, %cst_29 [0] : vector<24x128xf32> to vector<128xf32>
    %63 = vector.shape_cast %62 : vector<128xf32> to vector<1x128xf32>
    %64 = math.log %63 : vector<1x128xf32>
    %65 = arith.addf %64, %58 : vector<1x128xf32>
    %cst_30 = arith.constant 0.000000e+00 : f32
    %66 = vector.broadcast %cst_30 : f32 to vector<24x128xf32>
    %67 = arith.select %56, %51, %66 : vector<24x128xi1>, vector<24x128xf32>
    %cst_31 = arith.constant dense<0.000000e+00> : vector<128xf32>
    %68 = vector.multi_reduction <add>, %67, %cst_31 [0] : vector<24x128xf32> to vector<128xf32>
    %69 = vector.shape_cast %68 : vector<128xf32> to vector<1x128xf32>
    %70 = arith.subf %65, %69 : vector<1x128xf32>
    %71 = arith.mulf %53, %70 : vector<1x128xf32>
    %72 = vector.shape_cast %71 : vector<1x128xf32> to vector<1x1x128xf32>
    %cst_32 = arith.constant dense<0.000000e+00> : vector<1xf32>
    %73 = vector.multi_reduction <add>, %72, %cst_32 [1, 2] : vector<1x1x128xf32> to vector<1xf32>
    %74 = vector.shape_cast %73 : vector<1xf32> to vector<1x1x1xf32>
    %75 = vector.extract %74[0, 0, 0] : f32 from vector<1x1x1xf32>
    %76 = vector.shape_cast %53 : vector<1x128xf32> to vector<1x1x128xf32>
    %cst_33 = arith.constant dense<0.000000e+00> : vector<1xf32>
    %77 = vector.multi_reduction <add>, %76, %cst_33 [1, 2] : vector<1x1x128xf32> to vector<1xf32>
    %78 = vector.shape_cast %77 : vector<1xf32> to vector<1x1x1xf32>
    %79 = vector.extract %78[0, 0, 0] : f32 from vector<1x1x1xf32>
    %c0_34 = arith.constant 0 : index
    %c0_35 = arith.constant 0 : index
    %c0_36 = arith.constant 0 : index
    %80 = vector.load %arg7[%c0_34, %c0_35, %c0_36] : memref<1x8x128xf32, #tpu.memory_space<vmem>>, vector<1x8x128xf32>
    %81 = vector.shape_cast %80 : vector<1x8x128xf32> to vector<8x128xf32>
    %c2_i32 = arith.constant 2 : i32
    %82 = vector.broadcast %c2_i32 : i32 to vector<8x128xi32>
    %83 = arith.cmpi eq, %0, %82 : vector<8x128xi32>
    %cst_37 = arith.constant 0.000000e+00 : f32
    %84 = vector.broadcast %75 : f32 to vector<8x128xf32>
    %85 = vector.broadcast %cst_37 : f32 to vector<8x128xf32>
    %86 = arith.select %83, %84, %85 : vector<8x128xi1>, vector<8x128xf32>
    %c3_i32 = arith.constant 3 : i32
    %87 = vector.broadcast %c3_i32 : i32 to vector<8x128xi32>
    %88 = arith.cmpi eq, %0, %87 : vector<8x128xi32>
    %cst_38 = arith.constant 0.000000e+00 : f32
    %89 = vector.broadcast %79 : f32 to vector<8x128xf32>
    %90 = vector.broadcast %cst_38 : f32 to vector<8x128xf32>
    %91 = arith.select %88, %89, %90 : vector<8x128xi1>, vector<8x128xf32>
    %92 = arith.addf %86, %91 : vector<8x128xf32>
    %93 = arith.addf %81, %92 : vector<8x128xf32>
    %c0_39 = arith.constant 0 : index
    %c0_40 = arith.constant 0 : index
    %c0_41 = arith.constant 0 : index
    %94 = vector.load %arg7[%c0_39, %c0_40, %c0_41] : memref<1x8x128xf32, #tpu.memory_space<vmem>>, vector<1x8x128xf32>
    %95 = vector.shape_cast %94 : vector<1x8x128xf32> to vector<8x128xf32>
    %96 = vector.shape_cast %93 : vector<8x128xf32> to vector<1x8x128xf32>
    tpu.vector_store %arg7[%c0_39, %c0_40, %c0_41], %96 {strides = array<i32>} : memref<1x8x128xf32, #tpu.memory_space<vmem>>, vector<1x8x128xf32>,
    return
  }
  func.func @transform_0(%arg0: i32) -> (i32, i32) {
    %c0_i32 = arith.constant 0 : i32
    %0 = arith.minsi %arg0, %c0_i32 : i32
    %c0_i32_0 = arith.constant 0 : i32
    %c0_i32_1 = arith.constant 0 : i32
    return %c0_i32_0, %0 : i32, i32
  }
  func.func @transform_1(%arg0: i32) -> (i32, i32) {
    %c0_i32 = arith.constant 0 : i32
    %0 = arith.minsi %arg0, %c0_i32 : i32
    %c0_i32_0 = arith.constant 0 : i32
    %c0_i32_1 = arith.constant 0 : i32
    return %c0_i32_0, %0 : i32, i32
  }
  func.func @transform_2(%arg0: i32) -> (i32, i32) {
    %c0_i32 = arith.constant 0 : i32
    %0 = arith.minsi %arg0, %c0_i32 : i32
    %c0_i32_0 = arith.constant 0 : i32
    %c0_i32_1 = arith.constant 0 : i32
    return %c0_i32_0, %0 : i32, i32
  }
  func.func @transform_3(%arg0: i32) -> (i32, i32) {
    %c0_i32 = arith.constant 0 : i32
    %0 = arith.minsi %arg0, %c0_i32 : i32
    %c0_i32_0 = arith.constant 0 : i32
    %c0_i32_1 = arith.constant 0 : i32
    return %c0_i32_0, %0 : i32, i32
  }
  func.func @transform_4(%arg0: i32) -> (i32, i32) {
    %c0_i32 = arith.constant 0 : i32
    %0 = arith.minsi %arg0, %c0_i32 : i32
    %c0_i32_0 = arith.constant 0 : i32
    %c0_i32_1 = arith.constant 0 : i32
    return %c0_i32_0, %0 : i32, i32
  }
  func.func @transform_5(%arg0: i32) -> (i32, i32) {
    %c0_i32 = arith.constant 0 : i32
    %0 = arith.minsi %arg0, %c0_i32 : i32
    %c0_i32_0 = arith.constant 0 : i32
    %c0_i32_1 = arith.constant 0 : i32
    return %c0_i32_0, %0 : i32, i32
  }
  func.func @transform_6(%arg0: i32) -> (i32, i32, i32) {
    %c0_i32 = arith.constant 0 : i32
    %c0_i32_0 = arith.constant 0 : i32
    %c0_i32_1 = arith.constant 0 : i32
    return %arg0, %c0_i32, %c0_i32_0 : i32, i32, i32
  }
}

</mosaic_0001>

<llo_original>
// kernel: jrnn_loss.1
$region0: #{jrnn_loss.1}
  #allocation0 [shape = 'u32[]', space=smem, size = 0x4, offset = 0x4, fixed_abs, tag = 'smem constant byte address 0x4 - core index']
  #allocation1 [shape = 'u32[144,128]{1,0:T(1,128)}', space=vmem, size = 0x12000, scoped, tag = 'internal scratch']
  %s0 = inlined_call_operand.vmem [shape: f32[35,128], index: 0, kind: input, shape index: {}]
  %s1 = inlined_call_operand.vmem [shape: s32[1,128], index: 1, kind: input, shape index: {}]
  %s2 = inlined_call_operand.vmem [shape: f32[1,128], index: 2, kind: input, shape index: {}]
  %s3 = inlined_call_operand.vmem [shape: f32[24,128], index: 3, kind: input, shape index: {}]
  %s4 = inlined_call_operand.vmem [shape: s32[1,128], index: 4, kind: input, shape index: {}]
  %s5 = inlined_call_operand.vmem [shape: f32[1,128], index: 5, kind: input, shape index: {}]
  %s6 = inlined_call_operand.vmem [shape: f32[1,8,128], index: 6, kind: output, shape index: {}]
  %s7 = sld [smem:[#allocation0]]
  $region34: #{jrnn_loss.1} parent=0
    _
  %s9 = ssub.s32 1, %s7
  %s10 = scalar_select 0, %s9, %s7
  // Predicated region
  $region2: #{jrnn_loss.1} parent=0 // pred_check
    _
  $region3: #{jrnn_loss.1} parent=0 // pred_check_branch
    %12 = sbr.rel (0) target = $region5
  $region4: #{jrnn_loss.1} parent=0 // pred_region
    _
  $region5: #{jrnn_loss.1} parent=0 // pred_fallthru
    _
  // Predicated region
  $region6: #{jrnn_loss.1} parent=0 // pred_check
    _
  $region7: #{jrnn_loss.1} parent=0 // pred_check_branch
    %14 = sbr.rel (0) target = $region9
  $region8: #{jrnn_loss.1} parent=0 // pred_region
    _
  $region9: #{jrnn_loss.1} parent=0 // pred_fallthru
    _
  // Predicated region
  $region10: #{jrnn_loss.1} parent=0 // pred_check
    _
  $region11: #{jrnn_loss.1} parent=0 // pred_check_branch
    %16 = sbr.rel (0) target = $region13
  $region12: #{jrnn_loss.1} parent=0 // pred_region
    _
  $region13: #{jrnn_loss.1} parent=0 // pred_fallthru
    _
  // Predicated region
  $region14: #{jrnn_loss.1} parent=0 // pred_check
    _
  $region15: #{jrnn_loss.1} parent=0 // pred_check_branch
    %18 = sbr.rel (0) target = $region17
  $region16: #{jrnn_loss.1} parent=0 // pred_region
    _
  $region17: #{jrnn_loss.1} parent=0 // pred_fallthru
    _
  // Predicated region
  $region18: #{jrnn_loss.1} parent=0 // pred_check
    _
  $region19: #{jrnn_loss.1} parent=0 // pred_check_branch
    %20 = sbr.rel (0) target = $region21
  $region20: #{jrnn_loss.1} parent=0 // pred_region
    _
  $region21: #{jrnn_loss.1} parent=0 // pred_fallthru
    _
  // Predicated region
  $region22: #{jrnn_loss.1} parent=0 // pred_check
    _
  $region23: #{jrnn_loss.1} parent=0 // pred_check_branch
    %22 = sbr.rel (0) target = $region25
  $region24: #{jrnn_loss.1} parent=0 // pred_region
    _
  $region25: #{jrnn_loss.1} parent=0 // pred_fallthru
    _
  %v23 = vlaneseq
  %v24 = vshrl.u32 %v23, 7
  %25 = vst [vmem:[%s6] sm:$0xff] 0.0
  %v26 = vld [vmem:[%s0] sm:$0xff]
  %v27 = vld [vmem:[%s0 + $0x8] sm:$0xff]
  %v28 = vld [vmem:[%s0 + $0x10] sm:$0xff]
  %v29 = vld [vmem:[%s0 + $0x18] sm:$0xff]
  %v30 = vld [vmem:[%s0 + $0x20] sm:$0x7]
  %v31 = vld [vmem:[%s1] sm:$0x1]
  %v32 = vld [vmem:[%s2] sm:$0x1]
  %v33 = vadd.s32 %v24, 8
  %v34 = vadd.s32 %v24, 16
  %v35 = vadd.s32 %v24, 24
  %v36 = vadd.s32 %v24, 32
  %v37 = vlaneseq
  %v38 = vshrl.u32 %v37, 7
  %v39 = vsub.s32 0, %v38
  %v40 = vrot.slane %v31, %v39
  %vm41 = vcmp.eq.s32.totalorder %v24, %v40
  %vm42 = vcmp.eq.s32.totalorder %v33, %v40
  %vm43 = vcmp.eq.s32.totalorder %v34, %v40
  %vm44 = vcmp.eq.s32.totalorder %v35, %v40
  %vm45 = vcmp.eq.s32.totalorder %v36, %v40
  %vm46 = vcmask 1042432
  %v47 = vsel %vm46, %v30, -inf
  %v48 = vmax.f32 %v26, %v47
  %v49 = vmax.f32 %v48, %v27
  %v50 = vmax.f32 %v28, %v29
  %v51 = vmax.f32 %v49, %v50
  %v52 = vrot.slane %v51, 4
  %v53 = vmax.f32 %v51, %v52
  %v54 = vrot.slane %v53, 2
  %v55 = vmax.f32 %v53, %v54
  %v56 = vrot.slane %v55, 1
  %v57 = vmax.f32 %v55, %v56
  %v58 = vsub.f32 %v26, %v57
  %v59 = vsub.f32 %v27, %v57
  %v60 = vsub.f32 %v28, %v57
  %v61 = vsub.f32 %v29, %v57
  %v62 = vsub.f32 %v30, %v57
  %v63 = vmul.f32 %v58, 1.442695
  %v64 = vpow.pop %v63
  %v65 = vmul.f32 %v59, 1.442695
  %v66 = vpow.pop %v65
  %v67 = vmul.f32 %v60, 1.442695
  %v68 = vpow.pop %v67
  %v69 = vmul.f32 %v61, 1.442695
  %v70 = vpow.pop %v69
  %v71 = vmul.f32 %v62, 1.442695
  %v72 = vpow.pop %v71
  %v73 = vadd.f32 %v64, %v66
  %v74 = vadd.f32 %v73, %v68
  %v75 = vadd.f32 %v74, %v70
  %v76 = vsel %vm46, %v72, 0.0
  %v77 = vadd.f32 %v75, %v76
  %v78 = vrot.slane %v77, 4
  %v79 = vadd.f32 %v77, %v78
  %v80 = vrot.slane %v79, 2
  %v81 = vadd.f32 %v79, %v80
  %v82 = vrot.slane %v81, 1
  %v83 = vadd.f32 %v81, %v82
  %v84 = vlog2.pop %v83
  %v85 = vmul.f32 %v84, 0.6931472
  %v86 = vadd.f32 %v85, %v57
  %v87 = vsel %vm41, %v26, 0.0
  %v88 = vsel %vm42, %v27, 0.0
  %v89 = vsel %vm43, %v28, 0.0
  %v90 = vsel %vm44, %v29, 0.0
  %v91 = vsel %vm45, %v30, 0.0
  %v92 = vadd.f32 %v87, %v88
  %v93 = vadd.f32 %v92, %v89
  %v94 = vadd.f32 %v93, %v90
  %v95 = vsel %vm46, %v91, 0.0
  %v96 = vadd.f32 %v94, %v95
  %v97 = vrot.slane %v96, 4
  %v98 = vadd.f32 %v96, %v97
  %v99 = vrot.slane %v98, 2
  %v100 = vadd.f32 %v98, %v99
  %v101 = vrot.slane %v100, 1
  %v102 = vadd.f32 %v100, %v101
  %v103 = vsub.f32 %v86, %v102
  %v104 = vmul.f32 %v32, %v103
  %vm105 = vcmask 1040384
  %v106 = vsel %vm105, %v104, 0.0
  %107 = vadd.xlane.f32.xlu0 %v106
  %v108 = vpop.xlane.xlu0 %107
  %v109 = vrot.slane %v108, 4
  %v110 = vadd.f32 %v108, %v109
  %v111 = vrot.slane %v110, 2
  %v112 = vadd.f32 %v110, %v111
  %v113 = vrot.slane %v112, 1
  %v114 = vadd.f32 %v112, %v113
  %s115 = vtos %v114
  %v116 = vsel %vm105, %v32, 0.0
  %117 = vadd.xlane.f32.xlu0 %v116
  %v118 = vpop.xlane.xlu0 %117
  %v119 = vrot.slane %v118, 4
  %v120 = vadd.f32 %v118, %v119
  %v121 = vrot.slane %v120, 2
  %v122 = vadd.f32 %v120, %v121
  %v123 = vrot.slane %v122, 1
  %v124 = vadd.f32 %v122, %v123
  %s125 = vtos %v124
  %v126 = vld [vmem:[%s6] sm:$0xff]
  %vm127 = vcmp.eq.s32.totalorder %v24, 0
  %v128 = vstv %s115
  %v129 = vsel %vm127, %v128, 0.0
  %vm130 = vcmp.eq.s32.totalorder %v24, 1
  %v131 = vstv %s125
  %v132 = vsel %vm130, %v131, 0.0
  %v133 = vadd.f32 %v129, %v132
  %v134 = vadd.f32 %v126, %v133
  %135 = vst [vmem:[%s6] sm:$0xff] %v134
  %v136 = vld [vmem:[%s3] sm:$0xff]
  %v137 = vld [vmem:[%s3 + $0x8] sm:$0xff]
  %v138 = vld [vmem:[%s3 + $0x10] sm:$0xff]
  %v139 = vld [vmem:[%s4] sm:$0x1]
  %v140 = vld [vmem:[%s5] sm:$0x1]
  %v141 = vlaneseq
  %v142 = vshrl.u32 %v141, 7
  %v143 = vsub.s32 0, %v142
  %v144 = vrot.slane %v139, %v143
  %vm145 = vcmp.eq.s32.totalorder %v24, %v144
  %vm146 = vcmp.eq.s32.totalorder %v33, %v144
  %vm147 = vcmp.eq.s32.totalorder %v34, %v144
  %v148 = vmax.f32 %v136, %v137
  %v149 = vmax.f32 %v148, %v138
  %v150 = vrot.slane %v149, 4
  %v151 = vmax.f32 %v149, %v150
  %v152 = vrot.slane %v151, 2
  %v153 = vmax.f32 %v151, %v152
  %v154 = vrot.slane %v153, 1
  %v155 = vmax.f32 %v153, %v154
  %v156 = vsub.f32 %v136, %v155
  %v157 = vsub.f32 %v137, %v155
  %v158 = vsub.f32 %v138, %v155
  %v159 = vmul.f32 %v156, 1.442695
  %v160 = vpow.pop %v159
  %v161 = vmul.f32 %v157, 1.442695
  %v162 = vpow.pop %v161
  %v163 = vmul.f32 %v158, 1.442695
  %v164 = vpow.pop %v163
  %v165 = vadd.f32 %v160, %v162
  %v166 = vadd.f32 %v165, %v164
  %v167 = vrot.slane %v166, 4
  %v168 = vadd.f32 %v166, %v167
  %v169 = vrot.slane %v168, 2
  %v170 = vadd.f32 %v168, %v169
  %v171 = vrot.slane %v170, 1
  %v172 = vadd.f32 %v170, %v171
  %v173 = vlog2.pop %v172
  %v174 = vmul.f32 %v173, 0.6931472
  %v175 = vadd.f32 %v174, %v155
  %v176 = vsel %vm145, %v136, 0.0
  %v177 = vsel %vm146, %v137, 0.0
  %v178 = vsel %vm147, %v138, 0.0
  %v179 = vadd.f32 %v176, %v177
  %v180 = vadd.f32 %v179, %v178
  %v181 = vrot.slane %v180, 4
  %v182 = vadd.f32 %v180, %v181
  %v183 = vrot.slane %v182, 2
  %v184 = vadd.f32 %v182, %v183
  %v185 = vrot.slane %v184, 1
  %v186 = vadd.f32 %v184, %v185
  %v187 = vsub.f32 %v175, %v186
  %v188 = vmul.f32 %v140, %v187
  %v189 = vsel %vm105, %v188, 0.0
  %190 = vadd.xlane.f32.xlu0 %v189
  %v191 = vpop.xlane.xlu0 %190
  %v192 = vrot.slane %v191, 4
  %v193 = vadd.f32 %v191, %v192
  %v194 = vrot.slane %v193, 2
  %v195 = vadd.f32 %v193, %v194
  %v196 = vrot.slane %v195, 1
  %v197 = vadd.f32 %v195, %v196
  %s198 = vtos %v197
  %v199 = vsel %vm105, %v140, 0.0
  %200 = vadd.xlane.f32.xlu0 %v199
  %v201 = vpop.xlane.xlu0 %200
  %v202 = vrot.slane %v201, 4
  %v203 = vadd.f32 %v201, %v202
  %v204 = vrot.slane %v203, 2
  %v205 = vadd.f32 %v203, %v204
  %v206 = vrot.slane %v205, 1
  %v207 = vadd.f32 %v205, %v206
  %s208 = vtos %v207
  %v209 = vld [vmem:[%s6] sm:$0xff]
  %vm210 = vcmp.eq.s32.totalorder %v24, 2
  %v211 = vstv %s198
  %v212 = vsel %vm210, %v211, 0.0
  %vm213 = vcmp.eq.s32.totalorder %v24, 3
  %v214 = vstv %s208
  %v215 = vsel %vm213, %v214, 0.0
  %v216 = vadd.f32 %v212, %v215
  %v217 = vadd.f32 %v209, %v216
  %218 = vst [vmem:[%s6] sm:$0xff] %v217
  // Predicated region
  $region26: #{jrnn_loss.1} parent=0 // pred_check
    _
  $region27: #{jrnn_loss.1} parent=0 // pred_check_branch
    %220 = sbr.rel (0) target = $region29
  $region28: #{jrnn_loss.1} parent=0 // pred_region
    _
  $region29: #{jrnn_loss.1} parent=0 // pred_fallthru
    _
  // Predicated region
  $region30: #{jrnn_loss.1} parent=0 // pred_check
    _
  $region31: #{jrnn_loss.1} parent=0 // pred_check_branch
    %222 = sbr.rel (0) target = $region33
  $region32: #{jrnn_loss.1} parent=0 // pred_region
    _
  $region33: #{jrnn_loss.1} parent=0 // pred_fallthru
    _

</llo_original>
